<compile_context>
chip_gen: v5e
topology: v5e:2x2
jax: 0.10.0
libtpu: 0.0.40
codegen_flags: <defaults>
</compile_context>

<pallas_src>
import jax
import jax.numpy as jnp
from jax.experimental import pallas as pl
from jax.experimental.pallas import tpu as pltpu

EPS = 1e-5
LANE = 128
SUBLANE = 8


def _round_up(x, m):
    return (x + m - 1) // m * m


# ----------------------------------------------------------------------------
# Kernel
# ----------------------------------------------------------------------------
def decoder_kernel(z_ref, w1_ref, b1_ref, w2_ref, b2_ref, o_ref):
    # z_ref : [TB, L_p]  bf16      (latent, padded to 128 lanes)
    # w1_ref: [L_p, H_p] bf16      b1_ref: [1, H_p] f32
    # w2_ref: [H_p, D_p] bf16      b2_ref: [1, D_p] f32   (BatchNorm folded in)
    # o_ref : [TB, D_p]  f32
    h = jnp.dot(z_ref[...], w1_ref[...], preferred_element_type=jnp.float32)
    h = jnp.maximum(h + b1_ref[...], 0.0)                      # linear1 + ReLU
    # BatchNorm (eval) folded into w2/b2; dropout = identity in eval mode.
    y = jnp.dot(h.astype(jnp.bfloat16), w2_ref[...],
                preferred_element_type=jnp.float32) + b2_ref[...]
    # sigmoid(y) = 1 / (1 + exp(-y)); exp on EUP, approx reciprocal on vrcp slot.
    o_ref[...] = pl.reciprocal(1.0 + jnp.exp(-y), approx=True)


# ----------------------------------------------------------------------------
# Parameter construction (PyTorch-equivalent init) and kernel-side prep
# ----------------------------------------------------------------------------
def make_params(key, input_dims, hidden_dims, latent_dims):
    """Deterministic init matching nn.Linear / nn.BatchNorm1d defaults.
    Linear weights are stored as [in, out] (transposed vs torch) for x @ W."""
    ks = jax.random.split(key, 4)

    def linear(kw, kb, fan_in, fan_out):
        bound = float(fan_in) ** -0.5
        w = jax.random.uniform(kw, (fan_in, fan_out), jnp.float32, -bound, bound)
        b = jax.random.uniform(kb, (fan_out,), jnp.float32, -bound, bound)
        return w, b

    w1, b1 = linear(ks[0], ks[1], latent_dims, hidden_dims)   # linear1
    w2, b2 = linear(ks[2], ks[3], hidden_dims, input_dims)    # linear2
    bn = (jnp.ones((hidden_dims,), jnp.float32),    # gamma
          jnp.zeros((hidden_dims,), jnp.float32),   # beta
          jnp.zeros((hidden_dims,), jnp.float32),   # running_mean
          jnp.ones((hidden_dims,), jnp.float32))    # running_var
    return {"w1": w1, "b1": b1, "w2": w2, "b2": b2, "bn": bn}


def _prepare_params(params):
    """Fold eval-mode BN into linear2, pad feature dims to 128, cast weights bf16."""
    w1, b1 = params["w1"], params["b1"]        # [L, H], [H]
    w2, b2 = params["w2"], params["b2"]        # [H, D], [D]
    g, beta, mean, var = params["bn"]          # each [H]

    s = g * jax.lax.rsqrt(var + EPS)
    w2f = w2 * s[:, None]                       # diag(g/sqrt(v+eps)) @ W2
    b2f = b2 + (beta - mean * s) @ w2

    L, H = w1.shape
    D = w2.shape[1]
    Lp, Hp, Dp = _round_up(L, LANE), _round_up(H, LANE), _round_up(D, LANE)

    w1p = jnp.zeros((Lp, Hp), jnp.float32).at[:L, :H].set(w1).astype(jnp.bfloat16)
    b1p = jnp.zeros((1, Hp), jnp.float32).at[0, :H].set(b1)
    w2p = jnp.zeros((Hp, Dp), jnp.float32).at[:H, :D].set(w2f).astype(jnp.bfloat16)
    b2p = jnp.zeros((1, Dp), jnp.float32).at[0, :D].set(b2f)
    return w1p, b1p, w2p, b2p


# ----------------------------------------------------------------------------
# Wrapper
# ----------------------------------------------------------------------------
@jax.jit
def decoder_forward(z, params):
    B, L = z.shape
    D = params["w2"].shape[1]

    w1p, b1p, w2p, b2p = _prepare_params(params)
    Lp, Hp = w1p.shape
    Dp = w2p.shape[1]

    # Batch tile: largest that fits a conservative VMEM budget shared by the
    # resident (double-buffered) weights and the streaming activation tiles.
    # 24 MiB working set + 32 MiB scoped limit is safe on every generation.
    weight_bytes = 2 * ((Lp * Hp + Hp * Dp) * 2 + (Hp + Dp) * 4)
    budget = 24 * 1024 * 1024
    TB = 1024
    while TB > SUBLANE and weight_bytes + 2 * TB * (Lp * 2 + Dp * 4) > budget:
        TB //= 2
    TB = min(TB, _round_up(B, SUBLANE))
    Bp = _round_up(B, TB)

    zp = jnp.zeros((Bp, Lp), jnp.bfloat16).at[:B, :L].set(z.astype(jnp.bfloat16))

    out = pl.pallas_call(
        decoder_kernel,
        out_shape=jax.ShapeDtypeStruct((Bp, Dp), jnp.float32),
        grid=(Bp // TB,),
        in_specs=[
            pl.BlockSpec((TB, Lp), lambda i: (i, 0)),   # z: batch-tiled
            pl.BlockSpec((Lp, Hp), lambda i: (0, 0)),   # w1: resident
            pl.BlockSpec((1, Hp), lambda i: (0, 0)),    # b1: resident
            pl.BlockSpec((Hp, Dp), lambda i: (0, 0)),   # w2 (BN folded): resident
            pl.BlockSpec((1, Dp), lambda i: (0, 0)),    # b2 (BN folded): resident
        ],
        out_specs=pl.BlockSpec((TB, Dp), lambda i: (i, 0)),
        compiler_params=pltpu.CompilerParams(
            dimension_semantics=("parallel",),
            vmem_limit_bytes=32 * 1024 * 1024,
        ),
    )(zp, w1p, b1p, w2p, b2p)

    return out[:B, :D]


def reference_forward(z, params):
    """Pure-JAX f32 reference (mirrors the PyTorch eval-mode forward)."""
    g, beta, mean, var = params["bn"]
    h = jnp.maximum(z @ params["w1"] + params["b1"], 0.0)
    h = (h - mean) * jax.lax.rsqrt(var + EPS) * g + beta
    # dropout: identity in eval mode
    return jax.nn.sigmoid(h @ params["w2"] + params["b2"])


if __name__ == "__main__":
    # Small shapes consistent with the module: z is [B, latent_dims];
    # input_dims corresponds to a flattened 4x4x4 image.
    B = 8
    latent_dims, hidden_dims, input_dims = 16, 32, 64

    key = jax.random.PRNGKey(0)
    kz, kp = jax.random.split(key)
    z = jax.random.normal(kz, (B, latent_dims), dtype=jnp.float32)
    params = make_params(kp, input_dims, hidden_dims, latent_dims)

    out = jax.block_until_ready(decoder_forward(z, params))
    ref = reference_forward(z, params)

    assert out.shape == (B, input_dims), out.shape
    # bf16 matmuls + approx reciprocal vs f32 reference -> loose tolerance.
    assert jnp.allclose(out, ref, atol=2e-2), float(jnp.max(jnp.abs(out - ref)))

    print("KERNEL_OK")
</pallas_src>

<mosaic_0001>
module attributes {stable_mosaic.version = 11 : i64} {
  func.func @decoder_kernel(%arg0: i32, %arg1: memref<8x128xbf16, #tpu.memory_space<vmem>>, %arg2: memref<128x128xbf16, #tpu.memory_space<vmem>>, %arg3: memref<1x128xf32, #tpu.memory_space<vmem>>, %arg4: memref<128x128xbf16, #tpu.memory_space<vmem>>, %arg5: memref<1x128xf32, #tpu.memory_space<vmem>>, %arg6: memref<8x128xf32, #tpu.memory_space<vmem>>) attributes {dimension_semantics = [#tpu.dimension_semantics<parallel>], iteration_bounds = array<i64: 1>, scalar_prefetch = 0 : i64, scratch_operands = 0 : i64, tpu.core_type = #tpu.core_type<tc>, window_params = [{transform_indices = @transform_0, window_bounds = array<i64: 8, 128>}, {pipeline_mode = #tpu.pipeline_mode<synchronous>, transform_indices = @transform_1, window_bounds = array<i64: 128, 128>}, {pipeline_mode = #tpu.pipeline_mode<synchronous>, transform_indices = @transform_2, window_bounds = array<i64: 1, 128>}, {pipeline_mode = #tpu.pipeline_mode<synchronous>, transform_indices = @transform_3, window_bounds = array<i64: 128, 128>}, {pipeline_mode = #tpu.pipeline_mode<synchronous>, transform_indices = @transform_4, window_bounds = array<i64: 1, 128>}, {transform_indices = @transform_5, window_bounds = array<i64: 8, 128>}]} {
    %c0 = arith.constant 0 : index
    %c0_0 = arith.constant 0 : index
    %0 = vector.load %arg1[%c0, %c0_0] : memref<8x128xbf16, #tpu.memory_space<vmem>>, vector<8x128xbf16>
    %c0_1 = arith.constant 0 : index
    %c0_2 = arith.constant 0 : index
    %1 = vector.load %arg2[%c0_1, %c0_2] : memref<128x128xbf16, #tpu.memory_space<vmem>>, vector<128x128xbf16>
    %cst = arith.constant dense<0.000000e+00> : vector<8x128xf32>
    %2 = tpu.matmul %0, %1, %cst {dimension_numbers = #tpu.dot_dimension_numbers<[1], [0], [0], [1], [0, 0, 1, 1], [], []>} : vector<8x128xbf16>, vector<128x128xbf16>, vector<8x128xf32> -> vector<8x128xf32>
    %c0_3 = arith.constant 0 : index
    %c0_4 = arith.constant 0 : index
    %3 = vector.load %arg3[%c0_3, %c0_4] : memref<1x128xf32, #tpu.memory_space<vmem>>, vector<1x128xf32>
    %4 = vector.broadcast %3 : vector<1x128xf32> to vector<8x128xf32>
    %5 = arith.addf %2, %4 : vector<8x128xf32>
    %cst_5 = arith.constant 0.000000e+00 : f32
    %6 = vector.broadcast %cst_5 : f32 to vector<8x128xf32>
    %7 = arith.maximumf %5, %6 : vector<8x128xf32>
    %8 = arith.truncf %7 : vector<8x128xf32> to vector<8x128xbf16>
    %c0_6 = arith.constant 0 : index
    %c0_7 = arith.constant 0 : index
    %9 = vector.load %arg4[%c0_6, %c0_7] : memref<128x128xbf16, #tpu.memory_space<vmem>>, vector<128x128xbf16>
    %cst_8 = arith.constant dense<0.000000e+00> : vector<8x128xf32>
    %10 = tpu.matmul %8, %9, %cst_8 {dimension_numbers = #tpu.dot_dimension_numbers<[1], [0], [0], [1], [0, 0, 1, 1], [], []>} : vector<8x128xbf16>, vector<128x128xbf16>, vector<8x128xf32> -> vector<8x128xf32>
    %c0_9 = arith.constant 0 : index
    %c0_10 = arith.constant 0 : index
    %11 = vector.load %arg5[%c0_9, %c0_10] : memref<1x128xf32, #tpu.memory_space<vmem>>, vector<1x128xf32>
    %12 = vector.broadcast %11 : vector<1x128xf32> to vector<8x128xf32>
    %13 = arith.addf %10, %12 : vector<8x128xf32>
    %cst_11 = arith.constant 0.000000e+00 : f32
    %14 = vector.broadcast %cst_11 : f32 to vector<8x128xf32>
    %15 = arith.subf %14, %13 : vector<8x128xf32>
    %16 = math.exp %15 : vector<8x128xf32>
    %cst_12 = arith.constant 1.000000e+00 : f32
    %17 = vector.broadcast %cst_12 : f32 to vector<8x128xf32>
    %18 = arith.addf %17, %16 : vector<8x128xf32>
    %19 = tpu.reciprocal %18 {approx = true} : vector<8x128xf32> -> vector<8x128xf32>
    %c0_13 = arith.constant 0 : index
    %c0_14 = arith.constant 0 : index
    %20 = vector.load %arg6[%c0_13, %c0_14] : memref<8x128xf32, #tpu.memory_space<vmem>>, vector<8x128xf32>
    tpu.vector_store %arg6[%c0_13, %c0_14], %19 {strides = array<i32>} : memref<8x128xf32, #tpu.memory_space<vmem>>, vector<8x128xf32>,
    return
  }
  func.func @transform_0(%arg0: i32) -> (i32, i32) {
    %c0_i32 = arith.constant 0 : i32
    %c0_i32_0 = arith.constant 0 : i32
    return %arg0, %c0_i32 : i32, i32
  }
  func.func @transform_1(%arg0: i32) -> (i32, i32) {
    %c0_i32 = arith.constant 0 : i32
    %c0_i32_0 = arith.constant 0 : i32
    %c0_i32_1 = arith.constant 0 : i32
    return %c0_i32, %c0_i32_0 : i32, i32
  }
  func.func @transform_2(%arg0: i32) -> (i32, i32) {
    %c0_i32 = arith.constant 0 : i32
    %c0_i32_0 = arith.constant 0 : i32
    %c0_i32_1 = arith.constant 0 : i32
    return %c0_i32, %c0_i32_0 : i32, i32
  }
  func.func @transform_3(%arg0: i32) -> (i32, i32) {
    %c0_i32 = arith.constant 0 : i32
    %c0_i32_0 = arith.constant 0 : i32
    %c0_i32_1 = arith.constant 0 : i32
    return %c0_i32, %c0_i32_0 : i32, i32
  }
  func.func @transform_4(%arg0: i32) -> (i32, i32) {
    %c0_i32 = arith.constant 0 : i32
    %c0_i32_0 = arith.constant 0 : i32
    %c0_i32_1 = arith.constant 0 : i32
    return %c0_i32, %c0_i32_0 : i32, i32
  }
  func.func @transform_5(%arg0: i32) -> (i32, i32) {
    %c0_i32 = arith.constant 0 : i32
    %c0_i32_0 = arith.constant 0 : i32
    return %arg0, %c0_i32 : i32, i32
  }
}

</mosaic_0001>

<llo_original>
// kernel: decoder_forward.1
$region0: #{decoder_forward.1}
  #allocation0 [shape = 'u32[]', space=smem, size = 0x4, offset = 0x4, fixed_abs, tag = 'smem constant byte address 0x4 - core index']
  #allocation1 [shape = 'u32[72,128]{1,0:T(1,128)}', space=vmem, size = 0x9000, scoped, tag = 'internal scratch']
  %s0 = inlined_call_operand.vmem [shape: bf16[8,128], index: 0, kind: input, shape index: {}]
  %s1 = inlined_call_operand.vmem [shape: bf16[128,128], index: 1, kind: input, shape index: {}]
  %s2 = inlined_call_operand.vmem [shape: f32[1,128], index: 2, kind: input, shape index: {}]
  %s3 = inlined_call_operand.vmem [shape: bf16[128,128], index: 3, kind: input, shape index: {}]
  %s4 = inlined_call_operand.vmem [shape: f32[1,128], index: 4, kind: input, shape index: {}]
  %s5 = inlined_call_operand.hbm [shape: f32[8,128], index: 5, kind: output, shape index: {}]
  %s6 = sld [smem:[#allocation0]]
  $region30: #{decoder_forward.1} parent=0
    _
  %s8 = ssub.s32 1, %s6
  %s9 = scalar_select 0, %s8, %s6
  $region1: #{decoder_forward.1} parent=0
    #allocation2 [shape = 'u8[4096]{0}', space=vmem, size = 0x1000, scoped, tag = 'output window, operand 0, single buffered']
    #allocation3 [shape = 's32[1]{0}', space=sflag, size = 0x4, scoped, tag = 'scoped memory for decoder_forward.1']
    %10 = vsyncpa [#allocation3], 0
    // Predicated region
    $region2: #{decoder_forward.1} parent=1 // pred_check
      _
    $region3: #{decoder_forward.1} parent=1 // pred_check_branch
      %12 = sbr.rel (0) target = $region5
    $region4: #{decoder_forward.1} parent=1 // pred_region
      _
    $region5: #{decoder_forward.1} parent=1 // pred_fallthru
      _
    // Predicated region
    $region6: #{decoder_forward.1} parent=1 // pred_check
      _
    $region7: #{decoder_forward.1} parent=1 // pred_check_branch
      %14 = sbr.rel (0) target = $region9
    $region8: #{decoder_forward.1} parent=1 // pred_region
      _
    $region9: #{decoder_forward.1} parent=1 // pred_fallthru
      _
    // Predicated region
    $region10: #{decoder_forward.1} parent=1 // pred_check
      _
    $region11: #{decoder_forward.1} parent=1 // pred_check_branch
      %16 = sbr.rel (0) target = $region13
    $region12: #{decoder_forward.1} parent=1 // pred_region
      _
    $region13: #{decoder_forward.1} parent=1 // pred_fallthru
      _
    // Predicated region
    $region14: #{decoder_forward.1} parent=1 // pred_check
      _
    $region15: #{decoder_forward.1} parent=1 // pred_check_branch
      %18 = sbr.rel (0) target = $region17
    $region16: #{decoder_forward.1} parent=1 // pred_region
      _
    $region17: #{decoder_forward.1} parent=1 // pred_fallthru
      _
    // Predicated region
    $region18: #{decoder_forward.1} parent=1 // pred_check
      _
    $region19: #{decoder_forward.1} parent=1 // pred_check_branch
      %20 = sbr.rel (0) target = $region21
    $region20: #{decoder_forward.1} parent=1 // pred_region
      _
    $region21: #{decoder_forward.1} parent=1 // pred_fallthru
      _
    %v21 = vld [vmem:[%s0] sm:$0xf]
    %v22 = vld [vmem:[%s1] sm:$0xf]
    %v23 = vld [vmem:[%s1 + $0x4] sm:$0xf]
    %v24 = vld [vmem:[%s1 + $0x8] sm:$0xf]
    %v25 = vld [vmem:[%s1 + $0xc] sm:$0xf]
    %v26 = vld [vmem:[%s1 + $0x10] sm:$0xf]
    %v27 = vld [vmem:[%s1 + $0x14] sm:$0xf]
    %v28 = vld [vmem:[%s1 + $0x18] sm:$0xf]
    %v29 = vld [vmem:[%s1 + $0x1c] sm:$0xf]
    %v30 = vld [vmem:[%s1 + $0x20] sm:$0xf]
    %v31 = vld [vmem:[%s1 + $0x24] sm:$0xf]
    %v32 = vld [vmem:[%s1 + $0x28] sm:$0xf]
    %v33 = vld [vmem:[%s1 + $0x2c] sm:$0xf]
    %v34 = vld [vmem:[%s1 + $0x30] sm:$0xf]
    %v35 = vld [vmem:[%s1 + $0x34] sm:$0xf]
    %v36 = vld [vmem:[%s1 + $0x38] sm:$0xf]
    %v37 = vld [vmem:[%s1 + $0x3c] sm:$0xf]
    %v38 = vld [vmem:[%s2] sm:$0x1]
    %v40 = vperm.slane %v38, 0
    %v58 = vunpack.c.l.b16 %v22
    %v59 = vunpack.c.l.b16 %v23
    %v60 = vunpack.c.l.b16 %v24
    %v61 = vunpack.c.l.b16 %v25
    %v62 = vunpack.c.l.b16 %v26
    %v63 = vunpack.c.l.b16 %v27
    %v64 = vunpack.c.l.b16 %v28
    %v65 = vunpack.c.l.b16 %v29
    %v66 = vunpack.c.l.b16 %v30
    %v67 = vunpack.c.l.b16 %v31
    %v68 = vunpack.c.l.b16 %v32
    %v69 = vunpack.c.l.b16 %v33
    %v70 = vunpack.c.l.b16 %v34
    %v71 = vunpack.c.l.b16 %v35
    %v72 = vunpack.c.l.b16 %v36
    %v73 = vunpack.c.l.b16 %v37
    %v74 = vpack.c.b16 %v59, %v58
    %v75 = vpack.c.b16 %v61, %v60
    %v76 = vpack.c.b16 %v63, %v62
    %v77 = vpack.c.b16 %v65, %v64
    %v78 = vpack.c.b16 %v67, %v66
    %v79 = vpack.c.b16 %v69, %v68
    %v80 = vpack.c.b16 %v71, %v70
    %v81 = vpack.c.b16 %v73, %v72
    %90 = vmatpush.bf16.msra.mxu0 %v81
    %91 = vmatpush.bf16.msra.mxu0 %v80
    %92 = vmatpush.bf16.msra.mxu0 %v79
    %93 = vmatpush.bf16.msra.mxu0 %v78
    %94 = vmatpush.bf16.msra.mxu0 %v77
    %95 = vmatpush.bf16.msra.mxu0 %v76
    %96 = vmatpush.bf16.msra.mxu0 %v75
    %97 = vmatpush.bf16.msra.mxu0 %v74
    %98 = vmatmul.bf16.gmra.mxu0 %v21
    %v99 = vpop.f32.mrf.mxu0
    %v100 = vadd.f32 %v40, %v99
    %v101 = vpop.f32.mrf.mxu0
    %102 = vdwg.mxu0
    %v103 = vmax.f32 %v100, 0.0
    %v104 = vpack.c.bf16 %v103, %v103
    %v105 = vld [vmem:[%s3] sm:$0xf]
    %v106 = vld [vmem:[%s3 + $0x4] sm:$0xf]
    %v107 = vld [vmem:[%s3 + $0x8] sm:$0xf]
    %v108 = vld [vmem:[%s3 + $0xc] sm:$0xf]
    %v109 = vld [vmem:[%s3 + $0x10] sm:$0xf]
    %v110 = vld [vmem:[%s3 + $0x14] sm:$0xf]
    %v111 = vld [vmem:[%s3 + $0x18] sm:$0xf]
    %v112 = vld [vmem:[%s3 + $0x1c] sm:$0xf]
    %v113 = vld [vmem:[%s3 + $0x20] sm:$0xf]
    %v114 = vld [vmem:[%s3 + $0x24] sm:$0xf]
    %v115 = vld [vmem:[%s3 + $0x28] sm:$0xf]
    %v116 = vld [vmem:[%s3 + $0x2c] sm:$0xf]
    %v117 = vld [vmem:[%s3 + $0x30] sm:$0xf]
    %v118 = vld [vmem:[%s3 + $0x34] sm:$0xf]
    %v119 = vld [vmem:[%s3 + $0x38] sm:$0xf]
    %v120 = vld [vmem:[%s3 + $0x3c] sm:$0xf]
    %v121 = vld [vmem:[%s4] sm:$0x1]
    %v123 = vperm.slane %v121, 0
    %v141 = vunpack.c.l.b16 %v105
    %v142 = vunpack.c.l.b16 %v106
    %v143 = vunpack.c.l.b16 %v107
    %v144 = vunpack.c.l.b16 %v108
    %v145 = vunpack.c.l.b16 %v109
    %v146 = vunpack.c.l.b16 %v110
    %v147 = vunpack.c.l.b16 %v111
    %v148 = vunpack.c.l.b16 %v112
    %v149 = vunpack.c.l.b16 %v113
    %v150 = vunpack.c.l.b16 %v114
    %v151 = vunpack.c.l.b16 %v115
    %v152 = vunpack.c.l.b16 %v116
    %v153 = vunpack.c.l.b16 %v117
    %v154 = vunpack.c.l.b16 %v118
    %v155 = vunpack.c.l.b16 %v119
    %v156 = vunpack.c.l.b16 %v120
    %v157 = vpack.c.b16 %v142, %v141
    %v158 = vpack.c.b16 %v144, %v143
    %v159 = vpack.c.b16 %v146, %v145
    %v160 = vpack.c.b16 %v148, %v147
    %v161 = vpack.c.b16 %v150, %v149
    %v162 = vpack.c.b16 %v152, %v151
    %v163 = vpack.c.b16 %v154, %v153
    %v164 = vpack.c.b16 %v156, %v155
    %173 = vmatpush.bf16.msra.mxu0 %v164
    %174 = vmatpush.bf16.msra.mxu0 %v163
    %175 = vmatpush.bf16.msra.mxu0 %v162
    %176 = vmatpush.bf16.msra.mxu0 %v161
    %177 = vmatpush.bf16.msra.mxu0 %v160
    %178 = vmatpush.bf16.msra.mxu0 %v159
    %179 = vmatpush.bf16.msra.mxu0 %v158
    %180 = vmatpush.bf16.msra.mxu0 %v157
    %181 = vmatmul.bf16.gmra.mxu0 %v104
    %v182 = vpop.f32.mrf.mxu0
    %v183 = vadd.f32 %v123, %v182
    %v184 = vpop.f32.mrf.mxu0
    %185 = vdwg.mxu0
    %v186 = vsub.f32 0.0, %v183
    %v187 = vmul.f32 %v186, 1.442695
    %v188 = vpow.pop %v187
    %v189 = vadd.f32 %v188, 1.0
    %v190 = vrcp.pop %v189
    %191 = vst [vmem:[#allocation2] sm:$0xff] %v190
    // Predicated region
    $region22: #{decoder_forward.1} parent=1 // pred_check
      _
    $region23: #{decoder_forward.1} parent=1 // pred_check_branch
      %193 = sbr.rel (0) target = $region25
    $region24: #{decoder_forward.1} parent=1 // pred_region
      %195 = vsyncadd [#allocation3], 0
      %s197 = sshll.u32 [#allocation2], 4
      %s198 = int_to_ptr.vmem [resolvable:$true] %s197
      %s199 = sshll.u32 %s5, 4
      %s200 = int_to_ptr.hbm [resolvable:$true] %s199
      %202 = dma.vmem_to_hbm [thread:$0]  %s198, 128, %s200, [#allocation3]
    $region25: #{decoder_forward.1} parent=1 // pred_fallthru
      _
    // Predicated region
    $region26: #{decoder_forward.1} parent=1 // pred_check
      _
    $region27: #{decoder_forward.1} parent=1 // pred_check_branch
      %204 = sbr.rel (0) target = $region29
    $region28: #{decoder_forward.1} parent=1 // pred_region
      %206 = dma.done [#allocation3], 128
    $region29: #{decoder_forward.1} parent=1 // pred_fallthru
      _
    %207 = vsyncpa [#allocation3], 1

</llo_original>
